<compile_context>
chip_gen: v7x
topology: tpu7x:2x2x1
jax: 0.10.0
libtpu: 0.0.40
codegen_flags: <defaults>
</compile_context>

<pallas_src>
import functools

import jax
import jax.numpy as jnp
from jax.experimental import pallas as pl
from jax.experimental.pallas import tpu as pltpu

BN_EPS = 1e-5
MXU_DTYPE = jnp.bfloat16  # MXU operand dtype; accumulation stays float32.


# ------------------------------ Pallas kernel ------------------------------- #

def _make_resblock_kernel(K, stride, pad, L1, Nb, Cout, use_res):
    """Fused conv1+bn1+tanh -> conv2+bn2 (+ 1x1 shortcut+bn) -> tanh.

    All activations are laid out channels-in-sublanes / (batch x length)-in-lanes,
    i.e. every MXU RHS and the output slab are (rows, Nb*L1) lane-dense tiles.
    """
    Lh = L1 + 2 * pad  # per-batch segment length inside the h scratch (with halo)

    def kernel(*refs):
        if use_res:
            (x_ref, w1_ref, w2_ref, ws_ref, sh_ref, out_ref, hbuf_ref) = refs
        else:
            (x_ref, w1_ref, w2_ref, sh_ref, out_ref, hbuf_ref) = refs

        # padded position p = i*stride + k  ->  phase k % stride, offset k // stride
        def in_tap(b, k):
            return x_ref[0, b * stride + (k % stride), :, pl.ds(k // stride, L1)]

        # ---- conv1 (+ folded BN1 scale) : one MXU contraction over K*Cin_p ----
        taps1 = jnp.concatenate(
            [jnp.concatenate([in_tap(b, k) for k in range(K)], axis=0)   # (K*Cin_p, L1)
             for b in range(Nb)], axis=1)                                # (K*Cin_p, Nb*L1)
        a1 = jnp.dot(w1_ref[...], taps1, preferred_element_type=jnp.float32)
        h = jnp.tanh(a1 + sh_ref[:, 0:1])                                # (Cout, Nb*L1) f32

        # ---- stash h (bf16) in VMEM with per-batch zero halos of width `pad` ----
        for b in range(Nb):
            if pad > 0:
                zeros = jnp.zeros((Cout, pad), hbuf_ref.dtype)
                hbuf_ref[:, pl.ds(b * Lh, pad)] = zeros
                hbuf_ref[:, pl.ds(b * Lh + pad + L1, pad)] = zeros
            hbuf_ref[:, pl.ds(b * Lh + pad, L1)] = (
                h[:, b * L1:(b + 1) * L1].astype(hbuf_ref.dtype))

        # ---- conv2 (+ folded BN2 scale) : one MXU contraction over K*Cout ----
        taps2 = jnp.concatenate(
            [jnp.concatenate([hbuf_ref[:, pl.ds(b * Lh + k, L1)] for k in range(K)],
                             axis=0)                                      # (K*Cout, L1)
             for b in range(Nb)], axis=1)                                # (K*Cout, Nb*L1)
        y = jnp.dot(w2_ref[...], taps2, preferred_element_type=jnp.float32) + sh_ref[:, 1:2]

        # ---- strided 1x1 shortcut (+ folded BN_s scale) ----
        if use_res:
            tap_s = jnp.concatenate(
                [x_ref[0, b * stride + (pad % stride), :, pl.ds(pad // stride, L1)]
                 for b in range(Nb)], axis=1)                            # (Cin_p, Nb*L1)
            y = y + jnp.dot(ws_ref[...], tap_s,
                            preferred_element_type=jnp.float32) + sh_ref[:, 2:3]

        out_ref[0] = jnp.tanh(y)                                         # lane-dense store
        # TODO(synk): nn.Dropout is identity in eval mode; training-mode dropout
        # (pltpu.prng_random_bits mask) intentionally not applied here.

    return kernel


# -------------------------------- JAX wrapper -------------------------------- #

def residual_block_forward(x_ncl, params, kernel_size, stride, use_res,
                           batch_block=None):
    """x_ncl: (N, C_in, L) f32 -> (N, C_out, L_out) f32 (PyTorch NCL layout)."""
    N, Cin, L = x_ncl.shape
    K = kernel_size
    pad = K // 2
    if use_res:
        assert K % 2 == 1, "odd kernel_size required for shape-matched shortcut"
    L1 = (L + 2 * pad - K) // stride + 1
    Cout = params["w1f"].shape[0]
    Cin_p = params["w1f"].shape[1] // K     # input channels padded to sublane multiple

    # --- batch packing: Nb batch items share one grid step (lanes = Nb*L1) ---
    if batch_block is None:
        # aim for >=128 lanes per step; on v7x (2 TCs) prefer batch_block=N//2
        # so grid=(2,) still splits across both TensorCores.
        cap = min(N, max(1, -(-128 // L1)))
        batch_block = max(d for d in range(1, cap + 1) if N % d == 0)
    Nb = batch_block
    assert N % Nb == 0
    num_blocks = N // Nb

    # --- phase split of the zero-padded input (fuses with the bf16 cast into one
    #     XLA copy):  x_ph[n, s, c, j] = x_pad[n, c, j*stride + s] ---
    off_max = (K - 1) // stride
    L_ph = max(off_max + L1, -(-(L + 2 * pad) // stride))
    x_pad = jnp.pad(x_ncl, ((0, 0), (0, Cin_p - Cin), (pad, stride * L_ph - L - pad)))
    x_ph = (x_pad.reshape(N, Cin_p, L_ph, stride)
                 .transpose(0, 3, 1, 2)                    # (N, stride, Cin_p, L_ph)
                 .astype(MXU_DTYPE)
                 .reshape(num_blocks, Nb * stride, Cin_p, L_ph))

    kernel = _make_resblock_kernel(K, stride, pad, L1, Nb, Cout, use_res)

    def const(p):   # weights / packed shifts: resident across the grid
        return pl.BlockSpec(p.shape, lambda g: (0, 0))

    in_specs = [pl.BlockSpec((1, Nb * stride, Cin_p, L_ph), lambda g: (g, 0, 0, 0)),
                const(params["w1f"]), const(params["w2f"])]
    args = [x_ph, params["w1f"], params["w2f"]]
    if use_res:
        in_specs.append(const(params["wsf"]))
        args.append(params["wsf"])
    in_specs.append(const(params["shifts"]))
    args.append(params["shifts"])

    grid_spec = pltpu.PrefetchScalarGridSpec(
        num_scalar_prefetch=0,
        grid=(num_blocks,),
        in_specs=in_specs,
        out_specs=pl.BlockSpec((1, Cout, Nb * L1), lambda g: (g, 0, 0)),
        scratch_shapes=[pltpu.VMEM((Cout, Nb * (L1 + 2 * pad)), MXU_DTYPE)],
    )
    out = pl.pallas_call(
        kernel,
        out_shape=jax.ShapeDtypeStruct((num_blocks, Cout, Nb * L1), jnp.float32),
        grid_spec=grid_spec,
        compiler_params=pltpu.CompilerParams(
            dimension_semantics=("parallel",)),
    )(*args)

    # lane-dense slab (blocks, Cout, Nb*L1) -> PyTorch (N, Cout, L1)
    return (out.reshape(num_blocks, Cout, Nb, L1)
               .transpose(0, 2, 1, 3)
               .reshape(N, Cout, L1))


# ------------------------------ param packing -------------------------------- #

def fold_bn(gamma, beta, mean, var, eps=BN_EPS):
    scale = gamma / jnp.sqrt(var + eps)
    shift = beta - mean * scale
    return scale.astype(jnp.float32), shift.astype(jnp.float32)


def pack_params(w1_pt, w2_pt, ws_pt, bn, use_res, sublane=8):
    """Fold BN scales into the conv weights (bf16 MXU operands) and pack shifts."""
    Cout, Cin, K = w1_pt.shape
    Cin_p = -(-Cin // sublane) * sublane     # pad input channels to sublane multiple

    def fold_w(w_pt, scale, cin_pad):        # PyTorch (Cout, Cin, K) -> (Cout, K*Cin_p)
        co, ci, k = w_pt.shape
        w = w_pt * scale[:, None, None]                      # absorb BN scale (f32)
        w = jnp.transpose(w, (0, 2, 1))                      # (Cout, K, Cin)
        w = jnp.pad(w, ((0, 0), (0, 0), (0, cin_pad - ci)))
        return w.reshape(co, k * cin_pad).astype(MXU_DTYPE)

    s1, b1 = fold_bn(*bn["bn1"])
    s2, b2 = fold_bn(*bn["bn2"])
    p = {"w1f": fold_w(w1_pt, s1, Cin_p),
         "w2f": fold_w(w2_pt, s2, Cout)}     # conv2 in-channels == Cout (no pad)
    shifts = [b1, b2]
    if use_res:
        ss, bs = fold_bn(*bn["bns"])
        p["wsf"] = fold_w(ws_pt, ss, Cin_p)                  # (Cout, Cin_p)
        shifts.append(bs)
    p["shifts"] = jnp.stack(shifts, axis=1)                  # (Cout, 2 or 3) f32
    return p


# ----------------------------- pure-JAX reference ----------------------------- #

def reference_forward(x, w1_pt, w2_pt, ws_pt, bn, kernel_size, stride, use_res,
                      emulate_kernel_dtypes=False):
    """emulate_kernel_dtypes=True mirrors the kernel's numerics exactly:
    BN scale folded into bf16 weights, bf16 activations, f32 accumulation."""
    pad = kernel_size // 2

    def conv_bn(x, w, bnp, stride, pad):
        gamma, beta, mean, var = bnp
        s = gamma / jnp.sqrt(var + BN_EPS)
        shift = beta - mean * s
        if emulate_kernel_dtypes:
            w = (w * s[:, None, None]).astype(MXU_DTYPE).astype(jnp.float32)
            x = x.astype(MXU_DTYPE).astype(jnp.float32)
            out = jax.lax.conv_general_dilated(
                x, w, (stride,), [(pad, pad)],
                dimension_numbers=("NCH", "OIH", "NCH"))
        else:
            out = jax.lax.conv_general_dilated(
                x, w, (stride,), [(pad, pad)],
                dimension_numbers=("NCH", "OIH", "NCH"))
            out = out * s[None, :, None]
        return out + shift[None, :, None]

    h = jnp.tanh(conv_bn(x, w1_pt, bn["bn1"], stride, pad))
    out = conv_bn(h, w2_pt, bn["bn2"], 1, pad)
    if use_res:
        out = out + conv_bn(x, ws_pt, bn["bns"], stride, 0)
    return jnp.tanh(out)


# ----------------------------------- main ------------------------------------ #

if __name__ == "__main__":
    # module config
    inchannel, outchannel = 4, 8
    kernel_size, stride = 3, 2
    use_res = True
    N, L = 2, 16   # x: (N, C_in, L) as for nn.Conv1d

    key = jax.random.PRNGKey(0)
    keys = jax.random.split(key, 8)

    x = jax.random.normal(keys[0], (N, inchannel, L), dtype=jnp.float32)

    # deterministic synthetic parameters (PyTorch Conv1d layout: (C_out, C_in, K))
    w1_pt = 0.2 * jax.random.normal(keys[1], (outchannel, inchannel, kernel_size), jnp.float32)
    w2_pt = 0.2 * jax.random.normal(keys[2], (outchannel, outchannel, kernel_size), jnp.float32)
    ws_pt = 0.2 * jax.random.normal(keys[3], (outchannel, inchannel, 1), jnp.float32)

    def bn_params(k):
        ks = jax.random.split(k, 4)
        gamma = 1.0 + 0.1 * jax.random.normal(ks[0], (outchannel,), jnp.float32)
        beta = 0.1 * jax.random.normal(ks[1], (outchannel,), jnp.float32)
        mean = 0.1 * jax.random.normal(ks[2], (outchannel,), jnp.float32)
        var = jax.random.uniform(ks[3], (outchannel,), jnp.float32, 0.5, 1.5)
        return gamma, beta, mean, var

    bn = {"bn1": bn_params(keys[4]), "bn2": bn_params(keys[5]), "bns": bn_params(keys[6])}
    params = pack_params(w1_pt, w2_pt, ws_pt, bn, use_res)

    fwd = jax.jit(functools.partial(
        residual_block_forward,
        kernel_size=kernel_size, stride=stride, use_res=use_res))
    out = jax.block_until_ready(fwd(x, params))

    # tight check vs a reference that emulates the kernel's bf16 MXU numerics
    ref_bf16 = reference_forward(x, w1_pt, w2_pt, ws_pt, bn,
                                 kernel_size, stride, use_res,
                                 emulate_kernel_dtypes=True)
    # semantic check vs the exact f32 PyTorch-equivalent math
    ref_f32 = reference_forward(x, w1_pt, w2_pt, ws_pt, bn,
                                kernel_size, stride, use_res)

    assert out.shape == ref_f32.shape, (out.shape, ref_f32.shape)
    assert jnp.allclose(out, ref_bf16, atol=2e-3, rtol=2e-3), \
        float(jnp.max(jnp.abs(out - ref_bf16)))
    assert jnp.allclose(out, ref_f32, atol=3e-2, rtol=3e-2), \
        float(jnp.max(jnp.abs(out - ref_f32)))

    print("KERNEL_OK")
</pallas_src>

<mosaic_0001>
module attributes {stable_mosaic.version = 11 : i64} {
  func.func @kernel(%arg0: i32, %arg1: memref<1x4x8x9xbf16, #tpu.memory_space<vmem>>, %arg2: memref<8x24xbf16, #tpu.memory_space<vmem>>, %arg3: memref<8x24xbf16, #tpu.memory_space<vmem>>, %arg4: memref<8x8xbf16, #tpu.memory_space<vmem>>, %arg5: memref<8x3xf32, #tpu.memory_space<vmem>>, %arg6: memref<1x8x16xf32, #tpu.memory_space<vmem>>, %arg7: memref<8x20xbf16, #tpu.memory_space<vmem>>) attributes {dimension_semantics = [#tpu.dimension_semantics<parallel>], iteration_bounds = array<i64: 1>, scalar_prefetch = 0 : i64, scratch_operands = 1 : i64, tpu.core_type = #tpu.core_type<tc>, window_params = [{transform_indices = @transform_0, window_bounds = array<i64: 1, 4, 8, 9>}, {pipeline_mode = #tpu.pipeline_mode<synchronous>, transform_indices = @transform_1, window_bounds = array<i64: 8, 24>}, {pipeline_mode = #tpu.pipeline_mode<synchronous>, transform_indices = @transform_2, window_bounds = array<i64: 8, 24>}, {pipeline_mode = #tpu.pipeline_mode<synchronous>, transform_indices = @transform_3, window_bounds = array<i64: 8, 8>}, {pipeline_mode = #tpu.pipeline_mode<synchronous>, transform_indices = @transform_4, window_bounds = array<i64: 8, 3>}, {transform_indices = @transform_5, window_bounds = array<i64: 1, 8, 16>}]} {
    %c0 = arith.constant 0 : index
    %c0_0 = arith.constant 0 : index
    %c0_1 = arith.constant 0 : index
    %c0_2 = arith.constant 0 : index
    %0 = vector.load %arg1[%c0, %c0_0, %c0_1, %c0_2] : memref<1x4x8x9xbf16, #tpu.memory_space<vmem>>, vector<1x1x8x8xbf16>
    %1 = vector.shape_cast %0 : vector<1x1x8x8xbf16> to vector<8x8xbf16>
    %c0_3 = arith.constant 0 : index
    %c1 = arith.constant 1 : index
    %c0_4 = arith.constant 0 : index
    %c0_5 = arith.constant 0 : index
    %2 = vector.load %arg1[%c0_3, %c1, %c0_4, %c0_5] : memref<1x4x8x9xbf16, #tpu.memory_space<vmem>>, vector<1x1x8x8xbf16>
    %3 = vector.shape_cast %2 : vector<1x1x8x8xbf16> to vector<8x8xbf16>
    %c0_6 = arith.constant 0 : index
    %c0_7 = arith.constant 0 : index
    %c0_8 = arith.constant 0 : index
    %c1_9 = arith.constant 1 : index
    %4 = vector.load %arg1[%c0_6, %c0_7, %c0_8, %c1_9] : memref<1x4x8x9xbf16, #tpu.memory_space<vmem>>, vector<1x1x8x8xbf16>
    %5 = vector.shape_cast %4 : vector<1x1x8x8xbf16> to vector<8x8xbf16>
    %6 = tpu.concatenate %1, %3, %5 in 0 : vector<8x8xbf16>, vector<8x8xbf16>, vector<8x8xbf16> -> vector<24x8xbf16>
    %c0_10 = arith.constant 0 : index
    %c2 = arith.constant 2 : index
    %c0_11 = arith.constant 0 : index
    %c0_12 = arith.constant 0 : index
    %7 = vector.load %arg1[%c0_10, %c2, %c0_11, %c0_12] : memref<1x4x8x9xbf16, #tpu.memory_space<vmem>>, vector<1x1x8x8xbf16>
    %8 = vector.shape_cast %7 : vector<1x1x8x8xbf16> to vector<8x8xbf16>
    %c0_13 = arith.constant 0 : index
    %c3 = arith.constant 3 : index
    %c0_14 = arith.constant 0 : index
    %c0_15 = arith.constant 0 : index
    %9 = vector.load %arg1[%c0_13, %c3, %c0_14, %c0_15] : memref<1x4x8x9xbf16, #tpu.memory_space<vmem>>, vector<1x1x8x8xbf16>
    %10 = vector.shape_cast %9 : vector<1x1x8x8xbf16> to vector<8x8xbf16>
    %c0_16 = arith.constant 0 : index
    %c2_17 = arith.constant 2 : index
    %c0_18 = arith.constant 0 : index
    %c1_19 = arith.constant 1 : index
    %11 = vector.load %arg1[%c0_16, %c2_17, %c0_18, %c1_19] : memref<1x4x8x9xbf16, #tpu.memory_space<vmem>>, vector<1x1x8x8xbf16>
    %12 = vector.shape_cast %11 : vector<1x1x8x8xbf16> to vector<8x8xbf16>
    %13 = tpu.concatenate %8, %10, %12 in 0 : vector<8x8xbf16>, vector<8x8xbf16>, vector<8x8xbf16> -> vector<24x8xbf16>
    %14 = tpu.concatenate %6, %13 in 1 : vector<24x8xbf16>, vector<24x8xbf16> -> vector<24x16xbf16>
    %c0_20 = arith.constant 0 : index
    %c0_21 = arith.constant 0 : index
    %15 = vector.load %arg2[%c0_20, %c0_21] : memref<8x24xbf16, #tpu.memory_space<vmem>>, vector<8x24xbf16>
    %cst = arith.constant dense<0.000000e+00> : vector<8x16xf32>
    %16 = tpu.matmul %15, %14, %cst {dimension_numbers = #tpu.dot_dimension_numbers<[1], [0], [0], [1], [0, 0, 1, 1], [], []>} : vector<8x24xbf16>, vector<24x16xbf16>, vector<8x16xf32> -> vector<8x16xf32>
    %c0_22 = arith.constant 0 : index
    %c0_23 = arith.constant 0 : index
    %17 = vector.load %arg5[%c0_22, %c0_23] : memref<8x3xf32, #tpu.memory_space<vmem>>, vector<8x1xf32>
    %18 = vector.broadcast %17 : vector<8x1xf32> to vector<8x16xf32>
    %19 = arith.addf %16, %18 : vector<8x16xf32>
    %20 = math.tanh %19 : vector<8x16xf32>
    %cst_24 = arith.constant 0.000000e+00 : bf16
    %21 = vector.broadcast %cst_24 : bf16 to vector<8x1xbf16>
    %c0_25 = arith.constant 0 : index
    %c0_26 = arith.constant 0 : index
    %22 = vector.load %arg7[%c0_25, %c0_26] : memref<8x20xbf16, #tpu.memory_space<vmem>>, vector<8x1xbf16>
    tpu.vector_store %arg7[%c0_25, %c0_26], %21 {strides = array<i32>} : memref<8x20xbf16, #tpu.memory_space<vmem>>, vector<8x1xbf16>,
    %c0_27 = arith.constant 0 : index
    %c9 = arith.constant 9 : index
    %23 = vector.load %arg7[%c0_27, %c9] : memref<8x20xbf16, #tpu.memory_space<vmem>>, vector<8x1xbf16>
    tpu.vector_store %arg7[%c0_27, %c9], %21 {strides = array<i32>} : memref<8x20xbf16, #tpu.memory_space<vmem>>, vector<8x1xbf16>,
    %24 = vector.extract_strided_slice %20 {offsets = [0, 0], sizes = [8, 8], strides = [1, 1]} : vector<8x16xf32> to vector<8x8xf32>
    %25 = arith.truncf %24 : vector<8x8xf32> to vector<8x8xbf16>
    %c0_28 = arith.constant 0 : index
    %c1_29 = arith.constant 1 : index
    %26 = vector.load %arg7[%c0_28, %c1_29] : memref<8x20xbf16, #tpu.memory_space<vmem>>, vector<8x8xbf16>
    tpu.vector_store %arg7[%c0_28, %c1_29], %25 {strides = array<i32>} : memref<8x20xbf16, #tpu.memory_space<vmem>>, vector<8x8xbf16>,
    %cst_30 = arith.constant 0.000000e+00 : bf16
    %27 = vector.broadcast %cst_30 : bf16 to vector<8x1xbf16>
    %c0_31 = arith.constant 0 : index
    %c10 = arith.constant 10 : index
    %28 = vector.load %arg7[%c0_31, %c10] : memref<8x20xbf16, #tpu.memory_space<vmem>>, vector<8x1xbf16>
    tpu.vector_store %arg7[%c0_31, %c10], %27 {strides = array<i32>} : memref<8x20xbf16, #tpu.memory_space<vmem>>, vector<8x1xbf16>,
    %c0_32 = arith.constant 0 : index
    %c19 = arith.constant 19 : index
    %29 = vector.load %arg7[%c0_32, %c19] : memref<8x20xbf16, #tpu.memory_space<vmem>>, vector<8x1xbf16>
    tpu.vector_store %arg7[%c0_32, %c19], %27 {strides = array<i32>} : memref<8x20xbf16, #tpu.memory_space<vmem>>, vector<8x1xbf16>,
    %30 = vector.extract_strided_slice %20 {offsets = [0, 8], sizes = [8, 8], strides = [1, 1]} : vector<8x16xf32> to vector<8x8xf32>
    %31 = arith.truncf %30 : vector<8x8xf32> to vector<8x8xbf16>
    %c0_33 = arith.constant 0 : index
    %c11 = arith.constant 11 : index
    %32 = vector.load %arg7[%c0_33, %c11] : memref<8x20xbf16, #tpu.memory_space<vmem>>, vector<8x8xbf16>
    tpu.vector_store %arg7[%c0_33, %c11], %31 {strides = array<i32>} : memref<8x20xbf16, #tpu.memory_space<vmem>>, vector<8x8xbf16>,
    %c0_34 = arith.constant 0 : index
    %c0_35 = arith.constant 0 : index
    %33 = vector.load %arg7[%c0_34, %c0_35] : memref<8x20xbf16, #tpu.memory_space<vmem>>, vector<8x8xbf16>
    %c0_36 = arith.constant 0 : index
    %c1_37 = arith.constant 1 : index
    %34 = vector.load %arg7[%c0_36, %c1_37] : memref<8x20xbf16, #tpu.memory_space<vmem>>, vector<8x8xbf16>
    %c0_38 = arith.constant 0 : index
    %c2_39 = arith.constant 2 : index
    %35 = vector.load %arg7[%c0_38, %c2_39] : memref<8x20xbf16, #tpu.memory_space<vmem>>, vector<8x8xbf16>
    %36 = tpu.concatenate %33, %34, %35 in 0 : vector<8x8xbf16>, vector<8x8xbf16>, vector<8x8xbf16> -> vector<24x8xbf16>
    %c0_40 = arith.constant 0 : index
    %c10_41 = arith.constant 10 : index
    %37 = vector.load %arg7[%c0_40, %c10_41] : memref<8x20xbf16, #tpu.memory_space<vmem>>, vector<8x8xbf16>
    %c0_42 = arith.constant 0 : index
    %c11_43 = arith.constant 11 : index
    %38 = vector.load %arg7[%c0_42, %c11_43] : memref<8x20xbf16, #tpu.memory_space<vmem>>, vector<8x8xbf16>
    %c0_44 = arith.constant 0 : index
    %c12 = arith.constant 12 : index
    %39 = vector.load %arg7[%c0_44, %c12] : memref<8x20xbf16, #tpu.memory_space<vmem>>, vector<8x8xbf16>
    %40 = tpu.concatenate %37, %38, %39 in 0 : vector<8x8xbf16>, vector<8x8xbf16>, vector<8x8xbf16> -> vector<24x8xbf16>
    %41 = tpu.concatenate %36, %40 in 1 : vector<24x8xbf16>, vector<24x8xbf16> -> vector<24x16xbf16>
    %c0_45 = arith.constant 0 : index
    %c0_46 = arith.constant 0 : index
    %42 = vector.load %arg3[%c0_45, %c0_46] : memref<8x24xbf16, #tpu.memory_space<vmem>>, vector<8x24xbf16>
    %cst_47 = arith.constant dense<0.000000e+00> : vector<8x16xf32>
    %43 = tpu.matmul %42, %41, %cst_47 {dimension_numbers = #tpu.dot_dimension_numbers<[1], [0], [0], [1], [0, 0, 1, 1], [], []>} : vector<8x24xbf16>, vector<24x16xbf16>, vector<8x16xf32> -> vector<8x16xf32>
    %c0_48 = arith.constant 0 : index
    %c1_49 = arith.constant 1 : index
    %44 = vector.load %arg5[%c0_48, %c1_49] : memref<8x3xf32, #tpu.memory_space<vmem>>, vector<8x1xf32>
    %45 = vector.broadcast %44 : vector<8x1xf32> to vector<8x16xf32>
    %46 = arith.addf %43, %45 : vector<8x16xf32>
    %c0_50 = arith.constant 0 : index
    %c1_51 = arith.constant 1 : index
    %c0_52 = arith.constant 0 : index
    %c0_53 = arith.constant 0 : index
    %47 = vector.load %arg1[%c0_50, %c1_51, %c0_52, %c0_53] : memref<1x4x8x9xbf16, #tpu.memory_space<vmem>>, vector<1x1x8x8xbf16>
    %48 = vector.shape_cast %47 : vector<1x1x8x8xbf16> to vector<8x8xbf16>
    %c0_54 = arith.constant 0 : index
    %c3_55 = arith.constant 3 : index
    %c0_56 = arith.constant 0 : index
    %c0_57 = arith.constant 0 : index
    %49 = vector.load %arg1[%c0_54, %c3_55, %c0_56, %c0_57] : memref<1x4x8x9xbf16, #tpu.memory_space<vmem>>, vector<1x1x8x8xbf16>
    %50 = vector.shape_cast %49 : vector<1x1x8x8xbf16> to vector<8x8xbf16>
    %51 = tpu.concatenate %48, %50 in 1 : vector<8x8xbf16>, vector<8x8xbf16> -> vector<8x16xbf16>
    %c0_58 = arith.constant 0 : index
    %c0_59 = arith.constant 0 : index
    %52 = vector.load %arg4[%c0_58, %c0_59] : memref<8x8xbf16, #tpu.memory_space<vmem>>, vector<8x8xbf16>
    %cst_60 = arith.constant dense<0.000000e+00> : vector<8x16xf32>
    %53 = tpu.matmul %52, %51, %cst_60 {dimension_numbers = #tpu.dot_dimension_numbers<[1], [0], [0], [1], [0, 0, 1, 1], [], []>} : vector<8x8xbf16>, vector<8x16xbf16>, vector<8x16xf32> -> vector<8x16xf32>
    %54 = arith.addf %46, %53 : vector<8x16xf32>
    %c0_61 = arith.constant 0 : index
    %c2_62 = arith.constant 2 : index
    %55 = vector.load %arg5[%c0_61, %c2_62] : memref<8x3xf32, #tpu.memory_space<vmem>>, vector<8x1xf32>
    %56 = vector.broadcast %55 : vector<8x1xf32> to vector<8x16xf32>
    %57 = arith.addf %54, %56 : vector<8x16xf32>
    %58 = math.tanh %57 : vector<8x16xf32>
    %c0_63 = arith.constant 0 : index
    %c0_64 = arith.constant 0 : index
    %c0_65 = arith.constant 0 : index
    %59 = vector.load %arg6[%c0_63, %c0_64, %c0_65] : memref<1x8x16xf32, #tpu.memory_space<vmem>>, vector<1x8x16xf32>
    %60 = vector.shape_cast %59 : vector<1x8x16xf32> to vector<8x16xf32>
    %61 = vector.shape_cast %58 : vector<8x16xf32> to vector<1x8x16xf32>
    tpu.vector_store %arg6[%c0_63, %c0_64, %c0_65], %61 {strides = array<i32>} : memref<1x8x16xf32, #tpu.memory_space<vmem>>, vector<1x8x16xf32>,
    return
  }
  func.func @transform_0(%arg0: i32) -> (i32, i32, i32, i32) {
    %c0_i32 = arith.constant 0 : i32
    %c0_i32_0 = arith.constant 0 : i32
    %c0_i32_1 = arith.constant 0 : i32
    %c0_i32_2 = arith.constant 0 : i32
    return %arg0, %c0_i32, %c0_i32_0, %c0_i32_1 : i32, i32, i32, i32
  }
  func.func @transform_1(%arg0: i32) -> (i32, i32) {
    %c0_i32 = arith.constant 0 : i32
    %c0_i32_0 = arith.constant 0 : i32
    %c0_i32_1 = arith.constant 0 : i32
    return %c0_i32, %c0_i32_0 : i32, i32
  }
  func.func @transform_2(%arg0: i32) -> (i32, i32) {
    %c0_i32 = arith.constant 0 : i32
    %c0_i32_0 = arith.constant 0 : i32
    %c0_i32_1 = arith.constant 0 : i32
    return %c0_i32, %c0_i32_0 : i32, i32
  }
  func.func @transform_3(%arg0: i32) -> (i32, i32) {
    %c0_i32 = arith.constant 0 : i32
    %c0_i32_0 = arith.constant 0 : i32
    %c0_i32_1 = arith.constant 0 : i32
    return %c0_i32, %c0_i32_0 : i32, i32
  }
  func.func @transform_4(%arg0: i32) -> (i32, i32) {
    %c0_i32 = arith.constant 0 : i32
    %c0_i32_0 = arith.constant 0 : i32
    %c0_i32_1 = arith.constant 0 : i32
    return %c0_i32, %c0_i32_0 : i32, i32
  }
  func.func @transform_5(%arg0: i32) -> (i32, i32, i32) {
    %c0_i32 = arith.constant 0 : i32
    %c0_i32_0 = arith.constant 0 : i32
    %c0_i32_1 = arith.constant 0 : i32
    return %arg0, %c0_i32, %c0_i32_0 : i32, i32, i32
  }
}

</mosaic_0001>

<llo_original>
// kernel: residual_block_forward.1
$region0: #{residual_block_forward.1}
  #allocation0 [shape = 'u32[]', space=smem, size = 0x4, offset = 0x4, fixed_abs, tag = 'smem constant byte address 0x4 - core index']
  #allocation1 [shape = 'u32[144,128]{1,0:T(1,128)}', space=vmem, size = 0x12000, scoped, tag = 'internal scratch']
  #allocation2 [shape = 'bf16[8,20]{1,0:T(8,128)(2,1)}', space=vmem, size = 0x800, scoped, tag = 'scratch operand']
  %s0 = inlined_call_operand.vmem [shape: bf16[1,4,8,9], index: 0, kind: input, shape index: {}]
  %s1 = inlined_call_operand.vmem [shape: bf16[8,24], index: 1, kind: input, shape index: {}]
  %s2 = inlined_call_operand.vmem [shape: bf16[8,24], index: 2, kind: input, shape index: {}]
  %s3 = inlined_call_operand.vmem [shape: bf16[8,8], index: 3, kind: input, shape index: {}]
  %s4 = inlined_call_operand.vmem [shape: f32[8,3], index: 4, kind: input, shape index: {}]
  %s5 = inlined_call_operand.vmem [shape: f32[1,8,16], index: 5, kind: output, shape index: {}]
  %s6 = sld [smem:[#allocation0]]
  $region30: #{residual_block_forward.1} parent=0
    _
  %s8 = ssub.s32 1, %s6
  %s9 = scalar_select 0, %s8, %s6
  // Predicated region
  $region2: #{residual_block_forward.1} parent=0 // pred_check
    _
  $region3: #{residual_block_forward.1} parent=0 // pred_check_branch
    %11 = sbr.rel (0) target = $region5
  $region4: #{residual_block_forward.1} parent=0 // pred_region
    _
  $region5: #{residual_block_forward.1} parent=0 // pred_fallthru
    _
  // Predicated region
  $region6: #{residual_block_forward.1} parent=0 // pred_check
    _
  $region7: #{residual_block_forward.1} parent=0 // pred_check_branch
    %13 = sbr.rel (0) target = $region9
  $region8: #{residual_block_forward.1} parent=0 // pred_region
    _
  $region9: #{residual_block_forward.1} parent=0 // pred_fallthru
    _
  // Predicated region
  $region10: #{residual_block_forward.1} parent=0 // pred_check
    _
  $region11: #{residual_block_forward.1} parent=0 // pred_check_branch
    %15 = sbr.rel (0) target = $region13
  $region12: #{residual_block_forward.1} parent=0 // pred_region
    _
  $region13: #{residual_block_forward.1} parent=0 // pred_fallthru
    _
  // Predicated region
  $region14: #{residual_block_forward.1} parent=0 // pred_check
    _
  $region15: #{residual_block_forward.1} parent=0 // pred_check_branch
    %17 = sbr.rel (0) target = $region17
  $region16: #{residual_block_forward.1} parent=0 // pred_region
    _
  $region17: #{residual_block_forward.1} parent=0 // pred_fallthru
    _
  // Predicated region
  $region18: #{residual_block_forward.1} parent=0 // pred_check
    _
  $region19: #{residual_block_forward.1} parent=0 // pred_check_branch
    %19 = sbr.rel (0) target = $region21
  $region20: #{residual_block_forward.1} parent=0 // pred_region
    _
  $region21: #{residual_block_forward.1} parent=0 // pred_fallthru
    _
  %v21 = vld [vmem:[%s0] sm:$0xf]
  %s22 = scalar_lea.vmem %s0, 4
  %v23 = vld [vmem:[%s22] sm:$0xf]
  %v25 = vunpack.c.l.b16 %v23
  %v26 = vpack.c.b16 %v25, %v25
  %v28 = vunpack.c.l.b16 %v21
  %v29 = vpack.c.b16 %v28, %v28
  %30 = vrot.lane.b32.xlu0 %v29, 127
  %v31 = vpop.permute.xlu0 %30
  %vm32 = vcmask 1043456
  %v35 = vsel %vm32, %v21, %v26
  %s36 = scalar_lea.vmem %s0, 8
  %v37 = vld [vmem:[%s36] sm:$0xf]
  %s38 = scalar_lea.vmem %s0, 12
  %v39 = vld [vmem:[%s38] sm:$0xf]
  %v41 = vunpack.c.l.b16 %v39
  %v42 = vpack.c.b16 %v41, %v41
  %v44 = vunpack.c.l.b16 %v37
  %v45 = vpack.c.b16 %v44, %v44
  %46 = vrot.lane.b32.xlu0 %v45, 127
  %v47 = vpop.permute.xlu0 %46
  %v50 = vsel %vm32, %v37, %v42
  %52 = vrot.lane.b32.xlu0 %v50, 8
  %v53 = vpop.permute.xlu0 %52
  %54 = vrot.lane.b32.xlu0 %v47, 8
  %v55 = vpop.permute.xlu0 %54
  %vm56 = vcmask 64512
  %v58 = vsel %vm56, %v35, %v53
  %v62 = vsel %vm56, %v31, %v55
  %v63 = vld [vmem:[%s1] sm:$0xf]
  %v64 = vld [vmem:[%s4] sm:$0xff]
  %66 = vset.pattern.permute.xlu0 0
  %67 = vperm.xlu0 %66, %v64
  %v68 = vpop.permute.xlu0 %67
  %vm70 = vcmask 195584
  %v72 = vsel %vm70, %v63, 0
  %v74 = vsel %vm32, %v62, 0
  %76 = vmatprep.subr.bf16.mxu0 0
  %77 = vmatpush1.bf16.msra.mxu0 %v58
  %78 = vmatprep.subr.bf16.mxu0 0
  %79 = vmatpush1.bf16.msra.mxu0 %v74
  %80 = vmatprep.subr.bf16.mxu0 0
  %81 = vmatpush1.bf16.msra.mxu0 0
  %82 = vmatprep.subr.bf16.mxu0 0
  %83 = vmatpush1.bf16.msra.mxu0 0
  %84 = vmatprep.subr.bf16.mxu0 0
  %85 = vmatpush1.bf16.msra.mxu0 0
  %86 = vmatprep.subr.bf16.mxu0 0
  %87 = vmatpush1.bf16.msra.mxu0 0
  %88 = vmatprep.subr.bf16.mxu0 0
  %89 = vmatpush1.bf16.msra.mxu0 0
  %90 = vmatprep.subr.bf16.mxu0 0
  %91 = vmatpush1.bf16.msra.mxu0 0
  %92 = vmatprep.subr.bf16.mxu0 0
  %93 = vmatpush1.bf16.msra.mxu0 0
  %94 = vmatprep.subr.bf16.mxu0 0
  %95 = vmatpush1.bf16.msra.mxu0 0
  %96 = vmatprep.subr.bf16.mxu0 0
  %97 = vmatpush1.bf16.msra.mxu0 0
  %98 = vmatprep.subr.bf16.mxu0 0
  %99 = vmatpush1.bf16.msra.mxu0 0
  %100 = vmatprep.subr.bf16.mxu0 0
  %101 = vmatpush1.bf16.msra.mxu0 0
  %102 = vmatprep.subr.bf16.mxu0 0
  %103 = vmatpush1.bf16.msra.mxu0 0
  %104 = vmatprep.subr.bf16.mxu0 0
  %105 = vmatpush1.bf16.msra.mxu0 0
  %106 = vmatprep.subr.bf16.mxu0 0
  %107 = vmatpush1.bf16.msra.mxu0 0
  %108 = vmatprep.mubr.bf16.mxu0 0
  %109 = vmatmul.mubr.bf16.gmra.mrb[0].mxu0 %v72
  %v110 = vpop.f32.mrb[0].mxu0
  %v111 = vadd.f32 %v68, %v110
  %v112 = vpop.f32.mrb[0].mxu0
  %v113 = vpop.f32.mrb[0].mxu0
  %v114 = vpop.f32.mrb[0].mxu0
  %115 = vdwg.mxu0
  %v116 = vtanh.pop %v111
  %vm117 = vcmask 3072
  %118 = vst.msk [vmem:[#allocation2] sm:$0xf] %vm117, 0
  %vm119 = vcmask 76872
  %120 = vst.msk [vmem:[#allocation2] sm:$0xf] %vm119, 0
  %v121 = vpack.c.bf16 %v116, %v116
  %v123 = vunpack.c.l.b16 %v121
  %v124 = vpack.c.b16 %v123, %v123
  %125 = vrot.lane.b32.xlu0 %v124, 1
  %v126 = vpop.permute.xlu0 %125
  %vm128 = vcmask 68616
  %129 = vst.msk [vmem:[#allocation2] sm:$0xf] %vm128, %v126
  %vm130 = vcmask 85072
  %131 = vst.msk [vmem:[#allocation2] sm:$0xf] %vm130, 0
  %vm132 = vcmask 158872
  %133 = vst.msk [vmem:[#allocation2] sm:$0xf] %vm132, 0
  %134 = vrot.lane.b32.xlu0 %v124, 3
  %v135 = vpop.permute.xlu0 %134
  %vm137 = vcmask 150616
  %138 = vst.msk [vmem:[#allocation2] sm:$0xf] %vm137, %v135
  %v139 = vld [vmem:[#allocation2] sm:$0xf]
  %v141 = vunpack.c.l.b16 %v139
  %v142 = vpack.c.b16 %v141, %v141
  %143 = vrot.lane.b32.xlu0 %v142, 127
  %v144 = vpop.permute.xlu0 %143
  %145 = vrot.lane.b32.xlu0 %v142, 126
  %v146 = vpop.permute.xlu0 %145
  %v149 = vsel %vm32, %v139, %v144
  %151 = vrot.lane.b32.xlu0 %v149, 126
  %v152 = vpop.permute.xlu0 %151
  %153 = vrot.lane.b32.xlu0 %v146, 126
  %v154 = vpop.permute.xlu0 %153
  %v156 = vsel %vm56, %v149, %v152
  %v160 = vsel %vm56, %v146, %v154
  %v161 = vld [vmem:[%s2] sm:$0xf]
  %v162 = vld [vmem:[%s4] sm:$0xff]
  %164 = vset.pattern.permute.xlu0 1
  %165 = vperm.xlu0 %164, %v162
  %v166 = vpop.permute.xlu0 %165
  %v169 = vsel %vm70, %v161, 0
  %v171 = vsel %vm32, %v160, 0
  %173 = vmatprep.subr.bf16.mxu0 0
  %174 = vmatpush1.bf16.msra.mxu0 %v156
  %175 = vmatprep.subr.bf16.mxu0 0
  %176 = vmatpush1.bf16.msra.mxu0 %v171
  %177 = vmatprep.subr.bf16.mxu0 0
  %178 = vmatpush1.bf16.msra.mxu0 0
  %179 = vmatprep.subr.bf16.mxu0 0
  %180 = vmatpush1.bf16.msra.mxu0 0
  %181 = vmatprep.subr.bf16.mxu0 0
  %182 = vmatpush1.bf16.msra.mxu0 0
  %183 = vmatprep.subr.bf16.mxu0 0
  %184 = vmatpush1.bf16.msra.mxu0 0
  %185 = vmatprep.subr.bf16.mxu0 0
  %186 = vmatpush1.bf16.msra.mxu0 0
  %187 = vmatprep.subr.bf16.mxu0 0
  %188 = vmatpush1.bf16.msra.mxu0 0
  %189 = vmatprep.subr.bf16.mxu0 0
  %190 = vmatpush1.bf16.msra.mxu0 0
  %191 = vmatprep.subr.bf16.mxu0 0
  %192 = vmatpush1.bf16.msra.mxu0 0
  %193 = vmatprep.subr.bf16.mxu0 0
  %194 = vmatpush1.bf16.msra.mxu0 0
  %195 = vmatprep.subr.bf16.mxu0 0
  %196 = vmatpush1.bf16.msra.mxu0 0
  %197 = vmatprep.subr.bf16.mxu0 0
  %198 = vmatpush1.bf16.msra.mxu0 0
  %199 = vmatprep.subr.bf16.mxu0 0
  %200 = vmatpush1.bf16.msra.mxu0 0
  %201 = vmatprep.subr.bf16.mxu0 0
  %202 = vmatpush1.bf16.msra.mxu0 0
  %203 = vmatprep.subr.bf16.mxu0 0
  %204 = vmatpush1.bf16.msra.mxu0 0
  %205 = vmatprep.mubr.bf16.mxu0 0
  %206 = vmatmul.mubr.bf16.gmra.mrb[0].mxu0 %v169
  %v207 = vpop.f32.mrb[0].mxu0
  %v208 = vadd.f32 %v166, %v207
  %v209 = vpop.f32.mrb[0].mxu0
  %v210 = vpop.f32.mrb[0].mxu0
  %v211 = vpop.f32.mrb[0].mxu0
  %212 = vdwg.mxu0
  %v213 = vld [vmem:[%s22] sm:$0xf]
  %v214 = vld [vmem:[%s38] sm:$0xf]
  %v216 = vunpack.c.l.b16 %v214
  %v217 = vpack.c.b16 %v216, %v216
  %218 = vrot.lane.b32.xlu0 %v217, 8
  %v219 = vpop.permute.xlu0 %218
  %v222 = vsel %vm56, %v213, %v219
  %v223 = vld [vmem:[%s3] sm:$0xf]
  %v225 = vsel %vm56, %v223, 0
  %v227 = vsel %vm32, %v222, 0
  %229 = vmatprep.subr.bf16.mxu0 0
  %230 = vmatpush1.bf16.msra.mxu0 %v227
  %231 = vmatprep.subr.bf16.mxu0 0
  %232 = vmatpush1.bf16.msra.mxu0 0
  %233 = vmatprep.subr.bf16.mxu0 0
  %234 = vmatpush1.bf16.msra.mxu0 0
  %235 = vmatprep.subr.bf16.mxu0 0
  %236 = vmatpush1.bf16.msra.mxu0 0
  %237 = vmatprep.subr.bf16.mxu0 0
  %238 = vmatpush1.bf16.msra.mxu0 0
  %239 = vmatprep.subr.bf16.mxu0 0
  %240 = vmatpush1.bf16.msra.mxu0 0
  %241 = vmatprep.subr.bf16.mxu0 0
  %242 = vmatpush1.bf16.msra.mxu0 0
  %243 = vmatprep.subr.bf16.mxu0 0
  %244 = vmatpush1.bf16.msra.mxu0 0
  %245 = vmatprep.subr.bf16.mxu0 0
  %246 = vmatpush1.bf16.msra.mxu0 0
  %247 = vmatprep.subr.bf16.mxu0 0
  %248 = vmatpush1.bf16.msra.mxu0 0
  %249 = vmatprep.subr.bf16.mxu0 0
  %250 = vmatpush1.bf16.msra.mxu0 0
  %251 = vmatprep.subr.bf16.mxu0 0
  %252 = vmatpush1.bf16.msra.mxu0 0
  %253 = vmatprep.subr.bf16.mxu0 0
  %254 = vmatpush1.bf16.msra.mxu0 0
  %255 = vmatprep.subr.bf16.mxu0 0
  %256 = vmatpush1.bf16.msra.mxu0 0
  %257 = vmatprep.subr.bf16.mxu0 0
  %258 = vmatpush1.bf16.msra.mxu0 0
  %259 = vmatprep.subr.bf16.mxu0 0
  %260 = vmatpush1.bf16.msra.mxu0 0
  %261 = vmatprep.mubr.bf16.mxu0 0
  %262 = vmatmul.mubr.bf16.gmra.mrb[0].mxu0 %v225
  %v263 = vpop.f32.mrb[0].mxu0
  %v264 = vadd.f32 0.0, %v263
  %v265 = vpop.f32.mrb[0].mxu0
  %v266 = vpop.f32.mrb[0].mxu0
  %v267 = vpop.f32.mrb[0].mxu0
  %268 = vdwg.mxu0
  %v269 = vadd.f32 %v208, %v264
  %270 = vset.pattern.permute.xlu0 2
  %271 = vperm.xlu0 %270, %v162
  %v272 = vpop.permute.xlu0 %271
  %v274 = vadd.f32 %v269, %v272
  %v275 = vtanh.pop %v274
  %vm276 = vcmask 130048
  %277 = vst.msk [vmem:[%s5] sm:$0xff] %vm276, %v275
  // Predicated region
  $region22: #{residual_block_forward.1} parent=0 // pred_check
    _
  $region23: #{residual_block_forward.1} parent=0 // pred_check_branch
    %279 = sbr.rel (0) target = $region25
  $region24: #{residual_block_forward.1} parent=0 // pred_region
    _
  $region25: #{residual_block_forward.1} parent=0 // pred_fallthru
    _
  // Predicated region
  $region26: #{residual_block_forward.1} parent=0 // pred_check
    _
  $region27: #{residual_block_forward.1} parent=0 // pred_check_branch
    %281 = sbr.rel (0) target = $region29
  $region28: #{residual_block_forward.1} parent=0 // pred_region
    _
  $region29: #{residual_block_forward.1} parent=0 // pred_fallthru
    _

</llo_original>
